<compile_context>
chip_gen: v7x
topology: tpu7x:2x2x1
jax: 0.10.0
libtpu: 0.0.40
codegen_flags: <defaults>
</compile_context>

<pallas_src>
import functools

import jax
import jax.numpy as jnp
from jax.experimental import pallas as pl
from jax.experimental.pallas import tpu as pltpu

INPUT_SIZE = 8     # feature columns X1..X8 in the Energy Efficiency dataset
OUTPUT_SIZE = 2    # targets Y1, Y2
HIDDEN = (128, 64, 32, 16, 8)
DIMS = (INPUT_SIZE,) + HIDDEN + (OUTPUT_SIZE,)
NUM_LAYERS = len(DIMS) - 1      # 6
LANE = 128                      # lane width; all hidden activations padded to this


def _round_up(n, m):
    return ((n + m - 1) // m) * m


def _mlp_kernel(x_ref, w_ref, b_ref, o_ref):
    """Fused 6-layer MLP on one batch tile.

    x_ref: (TILE_B, INPUT_SIZE)          f32 input tile
    w_ref: (NUM_LAYERS, 128, 128)        zero-padded packed weights (VMEM-resident)
    b_ref: (NUM_LAYERS, 1, 128)          zero-padded packed biases, f32
    o_ref: (TILE_B, OUTPUT_SIZE)         real output columns only
    """
    cdt = w_ref.dtype  # matmul operand dtype (bf16 by default, f32 optional)

    # Layer 0: only the real INPUT_SIZE rows of the packed weight slab.
    h = jnp.dot(x_ref[...].astype(cdt), w_ref[0, :INPUT_SIZE, :],
                preferred_element_type=jnp.float32)
    h = jnp.maximum(h + b_ref[0], 0.0)

    # Layers 1..4: uniform 128x128 matmuls; zero padding keeps the math exact
    # and costs no extra MXU pushes (K,N < 128 still occupy one lane block).
    for l in range(1, NUM_LAYERS - 1):
        h = jnp.dot(h.astype(cdt), w_ref[l], preferred_element_type=jnp.float32)
        h = jnp.maximum(h + b_ref[l], 0.0)

    # Final layer: no ReLU. Store only the real output columns (tiny masked
    # vst; output HBM traffic is 8 B/row instead of 512 B/row).
    h = jnp.dot(h.astype(cdt), w_ref[NUM_LAYERS - 1],
                preferred_element_type=jnp.float32)
    h = h + b_ref[NUM_LAYERS - 1]
    o_ref[...] = h[:, :OUTPUT_SIZE].astype(o_ref.dtype)


def pack_params(params, compute_dtype=jnp.bfloat16):
    """Pack per-layer (W, b) into one zero-padded weight slab and one bias slab.

    Call this ONCE when the parameters are created (not per forward call).
    """
    compute_dtype = jnp.dtype(compute_dtype)
    w_packed = jnp.zeros((NUM_LAYERS, LANE, LANE), compute_dtype)
    b_packed = jnp.zeros((NUM_LAYERS, 1, LANE), jnp.float32)
    for l, (w, b) in enumerate(params):
        fi, fo = w.shape
        w_packed = w_packed.at[l, :fi, :fo].set(w.astype(compute_dtype))
        b_packed = b_packed.at[l, 0, :fo].set(b.reshape(-1).astype(jnp.float32))
    return w_packed, b_packed


@functools.partial(jax.jit, static_argnames=("tile_b", "out_dtype"))
def efficiency_model_forward(x, w_packed, b_packed, *, tile_b=2048,
                             out_dtype=jnp.float32):
    """x: (B, INPUT_SIZE) (or any (B, ...) flattening to INPUT_SIZE features).

    w_packed / b_packed: output of pack_params().  The matmul operand dtype is
    taken from w_packed.dtype (bf16 default, f32 for exact numerics);
    accumulation is always f32.
    """
    batch = x.shape[0]
    x = x.reshape(batch, -1).astype(jnp.float32)   # mirrors xb.view(xb.size(0), -1)
    assert x.shape[1] == INPUT_SIZE, x.shape

    cdt = jnp.dtype(w_packed.dtype)
    row_mult = 16 if cdt == jnp.dtype(jnp.bfloat16) else 8

    # Batch tile: big enough to amortize per-grid-step overhead, never larger
    # than the (sublane-rounded) real batch.
    b_rounded = _round_up(batch, row_mult)
    tile_b = max(row_mult, min(tile_b, b_rounded))
    tile_b = _round_up(tile_b, row_mult)
    # Split mid/large single-tile batches into >=2 grid steps so the
    # "parallel" batch axis can shard across v7x's two TensorCores.
    if b_rounded > 256 and b_rounded <= tile_b:
        tile_b = _round_up((b_rounded + 1) // 2, row_mult)
    b_pad = _round_up(batch, tile_b)
    if b_pad != batch:
        x = jnp.pad(x, ((0, b_pad - batch), (0, 0)))

    grid = (b_pad // tile_b,)

    # Advisory cost: actual (padded) MXU work + real bytes moved.
    flops = 2 * b_pad * (INPUT_SIZE * LANE + (NUM_LAYERS - 1) * LANE * LANE)
    bytes_accessed = (x.size * x.dtype.itemsize
                      + w_packed.size * w_packed.dtype.itemsize
                      + b_packed.size * b_packed.dtype.itemsize
                      + b_pad * OUTPUT_SIZE * jnp.dtype(out_dtype).itemsize)

    out = pl.pallas_call(
        _mlp_kernel,
        out_shape=jax.ShapeDtypeStruct((b_pad, OUTPUT_SIZE), out_dtype),
        grid=grid,
        in_specs=[
            # Input tile marches over the batch (pipelined DMA).
            pl.BlockSpec((tile_b, INPUT_SIZE), lambda i: (i, 0)),
            # Packed weights / biases: constant block index -> fetched once,
            # VMEM-resident for every grid step.
            pl.BlockSpec((NUM_LAYERS, LANE, LANE), lambda i: (0, 0, 0)),
            pl.BlockSpec((NUM_LAYERS, 1, LANE), lambda i: (0, 0, 0)),
        ],
        out_specs=pl.BlockSpec((tile_b, OUTPUT_SIZE), lambda i: (i, 0)),
        compiler_params=pltpu.CompilerParams(
            dimension_semantics=("parallel",)),   # megacore sharding on v7x
        cost_estimate=pl.CostEstimate(
            flops=flops, transcendentals=0, bytes_accessed=bytes_accessed),
    )(x, w_packed, b_packed)

    # Only the padded batch rows are trimmed; columns are already real.
    return out[:batch]


def init_params(key):
    """Deterministic init matching PyTorch nn.Linear default: U(-1/sqrt(fan_in), +1/sqrt(fan_in))."""
    params = []
    for i in range(NUM_LAYERS):
        fan_in, fan_out = DIMS[i], DIMS[i + 1]
        key, kw, kb = jax.random.split(key, 3)
        bound = 1.0 / (fan_in ** 0.5)
        w = jax.random.uniform(kw, (fan_in, fan_out), jnp.float32, -bound, bound)
        b = jax.random.uniform(kb, (1, fan_out), jnp.float32, -bound, bound)
        params.append((w, b))
    return params


def _reference_forward(x, params):
    h = x.reshape(x.shape[0], -1)
    for i, (w, b) in enumerate(params):
        h = h @ w + b
        if i < len(params) - 1:
            h = jnp.maximum(h, 0.0)
    return h


if __name__ == "__main__":
    key = jax.random.PRNGKey(0)
    key_x, key_p = jax.random.split(key)

    params = init_params(key_p)
    # Pack ONCE (hoisted out of the per-call path).
    wp_f32, bp_f32 = pack_params(params, compute_dtype=jnp.float32)
    wp_bf16, bp_bf16 = pack_params(params)   # bf16 default

    # --- exact f32 path, small batch (single tile) ---
    batch = 8
    x = jax.random.normal(key_x, (batch, INPUT_SIZE), dtype=jnp.float32)
    out = efficiency_model_forward(x, wp_f32, bp_f32)
    out = jax.block_until_ready(out)
    assert out.shape == (batch, OUTPUT_SIZE), out.shape
    ref = _reference_forward(x, params)
    assert jnp.allclose(out, ref, atol=1e-4, rtol=1e-4), (out, ref)

    # --- f32 path, larger batch exercising multi-tile grid + batch padding ---
    batch2 = 300
    x2 = jax.random.normal(jax.random.PRNGKey(1), (batch2, INPUT_SIZE), jnp.float32)
    out2 = efficiency_model_forward(x2, wp_f32, bp_f32, tile_b=128)
    out2 = jax.block_until_ready(out2)
    assert out2.shape == (batch2, OUTPUT_SIZE), out2.shape
    ref2 = _reference_forward(x2, params)
    assert jnp.allclose(out2, ref2, atol=1e-4, rtol=1e-4), (out2, ref2)

    # --- bf16 default path (f32 accumulation), default tile_b / split logic ---
    out3 = efficiency_model_forward(x2, wp_bf16, bp_bf16)
    out3 = jax.block_until_ready(out3)
    assert out3.shape == (batch2, OUTPUT_SIZE), out3.shape
    # bf16 operands: loose tolerance vs the f32 reference (smoke test only).
    assert jnp.allclose(out3, ref2, atol=1e-1, rtol=1e-1), (out3, ref2)

    print("KERNEL_OK")
</pallas_src>

<mosaic_0001>
module attributes {stable_mosaic.version = 11 : i64} {
  func.func @_mlp_kernel(%arg0: i32, %arg1: memref<8x8xf32, #tpu.memory_space<vmem>>, %arg2: memref<6x128x128xf32, #tpu.memory_space<vmem>>, %arg3: memref<6x1x128xf32, #tpu.memory_space<vmem>>, %arg4: memref<8x2xf32, #tpu.memory_space<vmem>>) attributes {dimension_semantics = [#tpu.dimension_semantics<parallel>], iteration_bounds = array<i64: 1>, scalar_prefetch = 0 : i64, scratch_operands = 0 : i64, tpu.core_type = #tpu.core_type<tc>, window_params = [{transform_indices = @transform_0, window_bounds = array<i64: 8, 8>}, {pipeline_mode = #tpu.pipeline_mode<synchronous>, transform_indices = @transform_1, window_bounds = array<i64: 6, 128, 128>}, {pipeline_mode = #tpu.pipeline_mode<synchronous>, transform_indices = @transform_2, window_bounds = array<i64: 6, 1, 128>}, {transform_indices = @transform_3, window_bounds = array<i64: 8, 2>}]} {
    %c0 = arith.constant 0 : index
    %c0_0 = arith.constant 0 : index
    %0 = vector.load %arg1[%c0, %c0_0] : memref<8x8xf32, #tpu.memory_space<vmem>>, vector<8x8xf32>
    %c0_1 = arith.constant 0 : index
    %c0_2 = arith.constant 0 : index
    %c0_3 = arith.constant 0 : index
    %1 = vector.load %arg2[%c0_1, %c0_2, %c0_3] : memref<6x128x128xf32, #tpu.memory_space<vmem>>, vector<1x8x128xf32>
    %2 = vector.shape_cast %1 : vector<1x8x128xf32> to vector<8x128xf32>
    %cst = arith.constant dense<0.000000e+00> : vector<8x128xf32>
    %3 = tpu.matmul %0, %2, %cst {dimension_numbers = #tpu.dot_dimension_numbers<[1], [0], [0], [1], [0, 0, 1, 1], [], []>} : vector<8x8xf32>, vector<8x128xf32>, vector<8x128xf32> -> vector<8x128xf32>
    %c0_4 = arith.constant 0 : index
    %c0_5 = arith.constant 0 : index
    %c0_6 = arith.constant 0 : index
    %4 = vector.load %arg3[%c0_4, %c0_5, %c0_6] : memref<6x1x128xf32, #tpu.memory_space<vmem>>, vector<1x1x128xf32>
    %5 = vector.shape_cast %4 : vector<1x1x128xf32> to vector<1x128xf32>
    %6 = vector.broadcast %5 : vector<1x128xf32> to vector<8x128xf32>
    %7 = arith.addf %3, %6 : vector<8x128xf32>
    %cst_7 = arith.constant 0.000000e+00 : f32
    %8 = vector.broadcast %cst_7 : f32 to vector<8x128xf32>
    %9 = arith.maximumf %7, %8 : vector<8x128xf32>
    %c1 = arith.constant 1 : index
    %c0_8 = arith.constant 0 : index
    %c0_9 = arith.constant 0 : index
    %10 = vector.load %arg2[%c1, %c0_8, %c0_9] : memref<6x128x128xf32, #tpu.memory_space<vmem>>, vector<1x128x128xf32>
    %11 = vector.shape_cast %10 : vector<1x128x128xf32> to vector<128x128xf32>
    %cst_10 = arith.constant dense<0.000000e+00> : vector<8x128xf32>
    %12 = tpu.matmul %9, %11, %cst_10 {dimension_numbers = #tpu.dot_dimension_numbers<[1], [0], [0], [1], [0, 0, 1, 1], [], []>} : vector<8x128xf32>, vector<128x128xf32>, vector<8x128xf32> -> vector<8x128xf32>
    %c1_11 = arith.constant 1 : index
    %c0_12 = arith.constant 0 : index
    %c0_13 = arith.constant 0 : index
    %13 = vector.load %arg3[%c1_11, %c0_12, %c0_13] : memref<6x1x128xf32, #tpu.memory_space<vmem>>, vector<1x1x128xf32>
    %14 = vector.shape_cast %13 : vector<1x1x128xf32> to vector<1x128xf32>
    %15 = vector.broadcast %14 : vector<1x128xf32> to vector<8x128xf32>
    %16 = arith.addf %12, %15 : vector<8x128xf32>
    %cst_14 = arith.constant 0.000000e+00 : f32
    %17 = vector.broadcast %cst_14 : f32 to vector<8x128xf32>
    %18 = arith.maximumf %16, %17 : vector<8x128xf32>
    %c2 = arith.constant 2 : index
    %c0_15 = arith.constant 0 : index
    %c0_16 = arith.constant 0 : index
    %19 = vector.load %arg2[%c2, %c0_15, %c0_16] : memref<6x128x128xf32, #tpu.memory_space<vmem>>, vector<1x128x128xf32>
    %20 = vector.shape_cast %19 : vector<1x128x128xf32> to vector<128x128xf32>
    %cst_17 = arith.constant dense<0.000000e+00> : vector<8x128xf32>
    %21 = tpu.matmul %18, %20, %cst_17 {dimension_numbers = #tpu.dot_dimension_numbers<[1], [0], [0], [1], [0, 0, 1, 1], [], []>} : vector<8x128xf32>, vector<128x128xf32>, vector<8x128xf32> -> vector<8x128xf32>
    %c2_18 = arith.constant 2 : index
    %c0_19 = arith.constant 0 : index
    %c0_20 = arith.constant 0 : index
    %22 = vector.load %arg3[%c2_18, %c0_19, %c0_20] : memref<6x1x128xf32, #tpu.memory_space<vmem>>, vector<1x1x128xf32>
    %23 = vector.shape_cast %22 : vector<1x1x128xf32> to vector<1x128xf32>
    %24 = vector.broadcast %23 : vector<1x128xf32> to vector<8x128xf32>
    %25 = arith.addf %21, %24 : vector<8x128xf32>
    %cst_21 = arith.constant 0.000000e+00 : f32
    %26 = vector.broadcast %cst_21 : f32 to vector<8x128xf32>
    %27 = arith.maximumf %25, %26 : vector<8x128xf32>
    %c3 = arith.constant 3 : index
    %c0_22 = arith.constant 0 : index
    %c0_23 = arith.constant 0 : index
    %28 = vector.load %arg2[%c3, %c0_22, %c0_23] : memref<6x128x128xf32, #tpu.memory_space<vmem>>, vector<1x128x128xf32>
    %29 = vector.shape_cast %28 : vector<1x128x128xf32> to vector<128x128xf32>
    %cst_24 = arith.constant dense<0.000000e+00> : vector<8x128xf32>
    %30 = tpu.matmul %27, %29, %cst_24 {dimension_numbers = #tpu.dot_dimension_numbers<[1], [0], [0], [1], [0, 0, 1, 1], [], []>} : vector<8x128xf32>, vector<128x128xf32>, vector<8x128xf32> -> vector<8x128xf32>
    %c3_25 = arith.constant 3 : index
    %c0_26 = arith.constant 0 : index
    %c0_27 = arith.constant 0 : index
    %31 = vector.load %arg3[%c3_25, %c0_26, %c0_27] : memref<6x1x128xf32, #tpu.memory_space<vmem>>, vector<1x1x128xf32>
    %32 = vector.shape_cast %31 : vector<1x1x128xf32> to vector<1x128xf32>
    %33 = vector.broadcast %32 : vector<1x128xf32> to vector<8x128xf32>
    %34 = arith.addf %30, %33 : vector<8x128xf32>
    %cst_28 = arith.constant 0.000000e+00 : f32
    %35 = vector.broadcast %cst_28 : f32 to vector<8x128xf32>
    %36 = arith.maximumf %34, %35 : vector<8x128xf32>
    %c4 = arith.constant 4 : index
    %c0_29 = arith.constant 0 : index
    %c0_30 = arith.constant 0 : index
    %37 = vector.load %arg2[%c4, %c0_29, %c0_30] : memref<6x128x128xf32, #tpu.memory_space<vmem>>, vector<1x128x128xf32>
    %38 = vector.shape_cast %37 : vector<1x128x128xf32> to vector<128x128xf32>
    %cst_31 = arith.constant dense<0.000000e+00> : vector<8x128xf32>
    %39 = tpu.matmul %36, %38, %cst_31 {dimension_numbers = #tpu.dot_dimension_numbers<[1], [0], [0], [1], [0, 0, 1, 1], [], []>} : vector<8x128xf32>, vector<128x128xf32>, vector<8x128xf32> -> vector<8x128xf32>
    %c4_32 = arith.constant 4 : index
    %c0_33 = arith.constant 0 : index
    %c0_34 = arith.constant 0 : index
    %40 = vector.load %arg3[%c4_32, %c0_33, %c0_34] : memref<6x1x128xf32, #tpu.memory_space<vmem>>, vector<1x1x128xf32>
    %41 = vector.shape_cast %40 : vector<1x1x128xf32> to vector<1x128xf32>
    %42 = vector.broadcast %41 : vector<1x128xf32> to vector<8x128xf32>
    %43 = arith.addf %39, %42 : vector<8x128xf32>
    %cst_35 = arith.constant 0.000000e+00 : f32
    %44 = vector.broadcast %cst_35 : f32 to vector<8x128xf32>
    %45 = arith.maximumf %43, %44 : vector<8x128xf32>
    %c5 = arith.constant 5 : index
    %c0_36 = arith.constant 0 : index
    %c0_37 = arith.constant 0 : index
    %46 = vector.load %arg2[%c5, %c0_36, %c0_37] : memref<6x128x128xf32, #tpu.memory_space<vmem>>, vector<1x128x128xf32>
    %47 = vector.shape_cast %46 : vector<1x128x128xf32> to vector<128x128xf32>
    %cst_38 = arith.constant dense<0.000000e+00> : vector<8x128xf32>
    %48 = tpu.matmul %45, %47, %cst_38 {dimension_numbers = #tpu.dot_dimension_numbers<[1], [0], [0], [1], [0, 0, 1, 1], [], []>} : vector<8x128xf32>, vector<128x128xf32>, vector<8x128xf32> -> vector<8x128xf32>
    %c5_39 = arith.constant 5 : index
    %c0_40 = arith.constant 0 : index
    %c0_41 = arith.constant 0 : index
    %49 = vector.load %arg3[%c5_39, %c0_40, %c0_41] : memref<6x1x128xf32, #tpu.memory_space<vmem>>, vector<1x1x128xf32>
    %50 = vector.shape_cast %49 : vector<1x1x128xf32> to vector<1x128xf32>
    %51 = vector.broadcast %50 : vector<1x128xf32> to vector<8x128xf32>
    %52 = arith.addf %48, %51 : vector<8x128xf32>
    %53 = vector.extract_strided_slice %52 {offsets = [0, 0], sizes = [8, 2], strides = [1, 1]} : vector<8x128xf32> to vector<8x2xf32>
    %c0_42 = arith.constant 0 : index
    %c0_43 = arith.constant 0 : index
    %54 = vector.load %arg4[%c0_42, %c0_43] : memref<8x2xf32, #tpu.memory_space<vmem>>, vector<8x2xf32>
    tpu.vector_store %arg4[%c0_42, %c0_43], %53 {strides = array<i32>} : memref<8x2xf32, #tpu.memory_space<vmem>>, vector<8x2xf32>,
    return
  }
  func.func @transform_0(%arg0: i32) -> (i32, i32) {
    %c0_i32 = arith.constant 0 : i32
    %c0_i32_0 = arith.constant 0 : i32
    return %arg0, %c0_i32 : i32, i32
  }
  func.func @transform_1(%arg0: i32) -> (i32, i32, i32) {
    %c0_i32 = arith.constant 0 : i32
    %c0_i32_0 = arith.constant 0 : i32
    %c0_i32_1 = arith.constant 0 : i32
    %c0_i32_2 = arith.constant 0 : i32
    return %c0_i32, %c0_i32_0, %c0_i32_1 : i32, i32, i32
  }
  func.func @transform_2(%arg0: i32) -> (i32, i32, i32) {
    %c0_i32 = arith.constant 0 : i32
    %c0_i32_0 = arith.constant 0 : i32
    %c0_i32_1 = arith.constant 0 : i32
    %c0_i32_2 = arith.constant 0 : i32
    return %c0_i32, %c0_i32_0, %c0_i32_1 : i32, i32, i32
  }
  func.func @transform_3(%arg0: i32) -> (i32, i32) {
    %c0_i32 = arith.constant 0 : i32
    %c0_i32_0 = arith.constant 0 : i32
    return %arg0, %c0_i32 : i32, i32
  }
}

</mosaic_0001>

<llo_original>
// kernel: efficiency_model_forward.1
$region0: #{efficiency_model_forward.1}
  #allocation0 [shape = 'u32[]', space=smem, size = 0x4, offset = 0x4, fixed_abs, tag = 'smem constant byte address 0x4 - core index']
  #allocation1 [shape = 'u32[144,128]{1,0:T(1,128)}', space=vmem, size = 0x12000, scoped, tag = 'internal scratch']
  %s0 = inlined_call_operand.hbm [shape: f32[8,8], index: 0, kind: input, shape index: {}]
  %s1 = inlined_call_operand.hbm [shape: f32[6,128,128], index: 1, kind: input, shape index: {}]
  %s2 = inlined_call_operand.vmem [shape: f32[6,1,128], index: 2, kind: input, shape index: {}]
  %s3 = inlined_call_operand.vmem [shape: f32[8,2], index: 3, kind: output, shape index: {}]
  %s4 = sld [smem:[#allocation0]]
  $region30: #{efficiency_model_forward.1} parent=0
    _
  %s6 = ssub.s32 1, %s4
  %s7 = scalar_select 0, %s6, %s4
  $region1: #{efficiency_model_forward.1} parent=0
    #allocation2 [shape = 'u8[4096]{0}', space=vmem, size = 0x1000, scoped, tag = 'input window, operand 0, single buffered']
    #allocation3 [shape = 's32[1]{0}', space=sflag, size = 0x4, scoped, tag = 'scoped memory for efficiency_model_forward.1']
    #allocation4 [shape = 'u8[393216]{0}', space=vmem, size = 0x60000, scoped, tag = 'input window, operand 1, single buffered']
    #allocation5 [shape = 's32[1]{0}', space=sflag, size = 0x4, scoped, tag = 'scoped memory for efficiency_model_forward.1']
    %8 = vsyncpa [#allocation3], 0
    %9 = vsyncpa [#allocation5], 0
    // Predicated region
    $region2: #{efficiency_model_forward.1} parent=1 // pred_check
      _
    $region3: #{efficiency_model_forward.1} parent=1 // pred_check_branch
      %11 = sbr.rel (0) target = $region5
    $region4: #{efficiency_model_forward.1} parent=1 // pred_region
      %s13 = ssub.s32 128, 128
      %14 = vsyncadd [#allocation3], %s13
      %s16 = sshll.u32 [#allocation2], 4
      %s17 = int_to_ptr.vmem [resolvable:$true] %s16
      %19 = dma.hbm_to_vmem [thread:$0]  %s0, 128, %s17, [#allocation3]
    $region5: #{efficiency_model_forward.1} parent=1 // pred_fallthru
      _
    // Predicated region
    $region6: #{efficiency_model_forward.1} parent=1 // pred_check
      _
    $region7: #{efficiency_model_forward.1} parent=1 // pred_check_branch
      %21 = sbr.rel (0) target = $region9
    $region8: #{efficiency_model_forward.1} parent=1 // pred_region
      %s23 = ssub.s32 12288, 12288
      %24 = vsyncadd [#allocation5], %s23
      %s25 = sshll.u32 [#allocation4], 4
      %s26 = int_to_ptr.vmem [resolvable:$true] %s25
      %31 = dma.hbm_to_vmem [thread:$0]  %s1, 12288, %s26, [#allocation5], 128, 128, 8
    $region9: #{efficiency_model_forward.1} parent=1 // pred_fallthru
      _
    // Predicated region
    $region10: #{efficiency_model_forward.1} parent=1 // pred_check
      _
    $region11: #{efficiency_model_forward.1} parent=1 // pred_check_branch
      %33 = sbr.rel (0) target = $region13
    $region12: #{efficiency_model_forward.1} parent=1 // pred_region
      _
    $region13: #{efficiency_model_forward.1} parent=1 // pred_fallthru
      _
    // Predicated region
    $region14: #{efficiency_model_forward.1} parent=1 // pred_check
      _
    $region15: #{efficiency_model_forward.1} parent=1 // pred_check_branch
      %35 = sbr.rel (0) target = $region17
    $region16: #{efficiency_model_forward.1} parent=1 // pred_region
      %36 = dma.done [#allocation3], 128
    $region17: #{efficiency_model_forward.1} parent=1 // pred_fallthru
      _
    // Predicated region
    $region18: #{efficiency_model_forward.1} parent=1 // pred_check
      _
    $region19: #{efficiency_model_forward.1} parent=1 // pred_check_branch
      %38 = sbr.rel (0) target = $region21
    $region20: #{efficiency_model_forward.1} parent=1 // pred_region
      %39 = dma.done [#allocation5], 12288
    $region21: #{efficiency_model_forward.1} parent=1 // pred_fallthru
      _
    %v40 = vld [vmem:[#allocation2] sm:$0xff]
    %v41 = vld [vmem:[#allocation4] sm:$0xff]
    %v42 = vld [vmem:[%s2] sm:$0x1]
    %v44 = vlaneseq
    %v45 = vshrl.u32 %v44, 7
    %v46 = vsub.s32 0, %v45
    %v47 = vrot.slane %v42, %v46
    %vm49 = vcmask 64512
    %v51 = vsel %vm49, %v40, 0
    %53 = vmatprep.subr.mxu0 0.0
    %54 = vmatpush1.msra.mxu0 %v41
    %55 = vmatprep.subr.mxu0 0.0
    %56 = vmatpush1.msra.mxu0 0.0
    %57 = vmatprep.subr.mxu0 0.0
    %58 = vmatpush1.msra.mxu0 0.0
    %59 = vmatprep.subr.mxu0 0.0
    %60 = vmatpush1.msra.mxu0 0.0
    %61 = vmatprep.subr.mxu0 0.0
    %62 = vmatpush1.msra.mxu0 0.0
    %63 = vmatprep.subr.mxu0 0.0
    %64 = vmatpush1.msra.mxu0 0.0
    %65 = vmatprep.subr.mxu0 0.0
    %66 = vmatpush1.msra.mxu0 0.0
    %67 = vmatprep.subr.mxu0 0.0
    %68 = vmatpush1.msra.mxu0 0.0
    %69 = vmatprep.subr.mxu0 0.0
    %70 = vmatpush1.msra.mxu0 0.0
    %71 = vmatprep.subr.mxu0 0.0
    %72 = vmatpush1.msra.mxu0 0.0
    %73 = vmatprep.subr.mxu0 0.0
    %74 = vmatpush1.msra.mxu0 0.0
    %75 = vmatprep.subr.mxu0 0.0
    %76 = vmatpush1.msra.mxu0 0.0
    %77 = vmatprep.subr.mxu0 0.0
    %78 = vmatpush1.msra.mxu0 0.0
    %79 = vmatprep.subr.mxu0 0.0
    %80 = vmatpush1.msra.mxu0 0.0
    %81 = vmatprep.subr.mxu0 0.0
    %82 = vmatpush1.msra.mxu0 0.0
    %83 = vmatprep.subr.mxu0 0.0
    %84 = vmatpush1.msra.mxu0 0.0
    %85 = vmatprep.subr.mxu0 0.0
    %86 = vmatpush1.msra.mxu0 0.0
    %87 = vmatprep.subr.mxu0 0.0
    %88 = vmatpush1.msra.mxu0 0.0
    %89 = vmatprep.subr.mxu0 0.0
    %90 = vmatpush1.msra.mxu0 0.0
    %91 = vmatprep.subr.mxu0 0.0
    %92 = vmatpush1.msra.mxu0 0.0
    %93 = vmatprep.subr.mxu0 0.0
    %94 = vmatpush1.msra.mxu0 0.0
    %95 = vmatprep.subr.mxu0 0.0
    %96 = vmatpush1.msra.mxu0 0.0
    %97 = vmatprep.subr.mxu0 0.0
    %98 = vmatpush1.msra.mxu0 0.0
    %99 = vmatprep.subr.mxu0 0.0
    %100 = vmatpush1.msra.mxu0 0.0
    %101 = vmatprep.subr.mxu0 0.0
    %102 = vmatpush1.msra.mxu0 0.0
    %103 = vmatprep.subr.mxu0 0.0
    %104 = vmatpush1.msra.mxu0 0.0
    %105 = vmatprep.subr.mxu0 0.0
    %106 = vmatpush1.msra.mxu0 0.0
    %107 = vmatprep.subr.mxu0 0.0
    %108 = vmatpush1.msra.mxu0 0.0
    %109 = vmatprep.subr.mxu0 0.0
    %110 = vmatpush1.msra.mxu0 0.0
    %111 = vmatprep.subr.mxu0 0.0
    %112 = vmatpush1.msra.mxu0 0.0
    %113 = vmatprep.subr.mxu0 0.0
    %114 = vmatpush1.msra.mxu0 0.0
    %115 = vmatprep.subr.mxu0 0.0
    %116 = vmatpush1.msra.mxu0 0.0
    %117 = vmatprep.mubr.f32.mxu0 0.0
    %118 = vmatmul.mubr.f32.gmra.mrb[0].mxu0 %v51
    %v119 = vpop.f32.mrb[0].mxu0
    %v120 = vadd.f32 %v47, %v119
    %v121 = vpop.f32.mrb[0].mxu0
    %122 = vdwg.mxu0
    %v123 = vmax.f32 %v120, 0.0
    %s124 = scalar_lea.vmem [#allocation4], 128
    %v125 = vld [vmem:[%s124] sm:$0xff]
    %v126 = vld [vmem:[%s124 + $0x8] sm:$0xff]
    %v127 = vld [vmem:[%s124 + $0x10] sm:$0xff]
    %v128 = vld [vmem:[%s124 + $0x18] sm:$0xff]
    %v129 = vld [vmem:[%s124 + $0x20] sm:$0xff]
    %v130 = vld [vmem:[%s124 + $0x28] sm:$0xff]
    %v131 = vld [vmem:[%s124 + $0x30] sm:$0xff]
    %v132 = vld [vmem:[%s124 + $0x38] sm:$0xff]
    %v133 = vld [vmem:[%s124 + $0x40] sm:$0xff]
    %v134 = vld [vmem:[%s124 + $0x48] sm:$0xff]
    %v135 = vld [vmem:[%s124 + $0x50] sm:$0xff]
    %v136 = vld [vmem:[%s124 + $0x58] sm:$0xff]
    %v137 = vld [vmem:[%s124 + $0x60] sm:$0xff]
    %v138 = vld [vmem:[%s124 + $0x68] sm:$0xff]
    %v139 = vld [vmem:[%s124 + $0x70] sm:$0xff]
    %v140 = vld [vmem:[%s124 + $0x78] sm:$0xff]
    %s141 = scalar_lea.vmem %s2, 1
    %v142 = vld [vmem:[%s141] sm:$0x1]
    %v144 = vlaneseq
    %v145 = vshrl.u32 %v144, 7
    %v146 = vsub.s32 0, %v145
    %v147 = vrot.slane %v142, %v146
    %149 = vmatprep.subr.mxu0 0.0
    %150 = vmatpush1.msra.mxu0 %v125
    %151 = vmatprep.subr.mxu0 0.0
    %152 = vmatpush1.msra.mxu0 %v126
    %153 = vmatprep.subr.mxu0 0.0
    %154 = vmatpush1.msra.mxu0 %v127
    %155 = vmatprep.subr.mxu0 0.0
    %156 = vmatpush1.msra.mxu0 %v128
    %157 = vmatprep.subr.mxu0 0.0
    %158 = vmatpush1.msra.mxu0 %v129
    %159 = vmatprep.subr.mxu0 0.0
    %160 = vmatpush1.msra.mxu0 %v130
    %161 = vmatprep.subr.mxu0 0.0
    %162 = vmatpush1.msra.mxu0 %v131
    %163 = vmatprep.subr.mxu0 0.0
    %164 = vmatpush1.msra.mxu0 %v132
    %165 = vmatprep.subr.mxu0 0.0
    %166 = vmatpush1.msra.mxu0 %v133
    %167 = vmatprep.subr.mxu0 0.0
    %168 = vmatpush1.msra.mxu0 %v134
    %169 = vmatprep.subr.mxu0 0.0
    %170 = vmatpush1.msra.mxu0 %v135
    %171 = vmatprep.subr.mxu0 0.0
    %172 = vmatpush1.msra.mxu0 %v136
    %173 = vmatprep.subr.mxu0 0.0
    %174 = vmatpush1.msra.mxu0 %v137
    %175 = vmatprep.subr.mxu0 0.0
    %176 = vmatpush1.msra.mxu0 %v138
    %177 = vmatprep.subr.mxu0 0.0
    %178 = vmatpush1.msra.mxu0 %v139
    %179 = vmatprep.subr.mxu0 0.0
    %180 = vmatpush1.msra.mxu0 %v140
    %181 = vmatprep.subr.mxu0 0.0
    %182 = vmatpush1.msra.mxu0 0.0
    %183 = vmatprep.subr.mxu0 0.0
    %184 = vmatpush1.msra.mxu0 0.0
    %185 = vmatprep.subr.mxu0 0.0
    %186 = vmatpush1.msra.mxu0 0.0
    %187 = vmatprep.subr.mxu0 0.0
    %188 = vmatpush1.msra.mxu0 0.0
    %189 = vmatprep.subr.mxu0 0.0
    %190 = vmatpush1.msra.mxu0 0.0
    %191 = vmatprep.subr.mxu0 0.0
    %192 = vmatpush1.msra.mxu0 0.0
    %193 = vmatprep.subr.mxu0 0.0
    %194 = vmatpush1.msra.mxu0 0.0
    %195 = vmatprep.subr.mxu0 0.0
    %196 = vmatpush1.msra.mxu0 0.0
    %197 = vmatprep.subr.mxu0 0.0
    %198 = vmatpush1.msra.mxu0 0.0
    %199 = vmatprep.subr.mxu0 0.0
    %200 = vmatpush1.msra.mxu0 0.0
    %201 = vmatprep.subr.mxu0 0.0
    %202 = vmatpush1.msra.mxu0 0.0
    %203 = vmatprep.subr.mxu0 0.0
    %204 = vmatpush1.msra.mxu0 0.0
    %205 = vmatprep.subr.mxu0 0.0
    %206 = vmatpush1.msra.mxu0 0.0
    %207 = vmatprep.subr.mxu0 0.0
    %208 = vmatpush1.msra.mxu0 0.0
    %209 = vmatprep.subr.mxu0 0.0
    %210 = vmatpush1.msra.mxu0 0.0
    %211 = vmatprep.subr.mxu0 0.0
    %212 = vmatpush1.msra.mxu0 0.0
    %213 = vmatprep.mubr.f32.mxu0 0.0
    %214 = vmatmul.mubr.f32.gmra.mrb[0].mxu0 %v123
    %v215 = vpop.f32.mrb[0].mxu0
    %v216 = vadd.f32 %v147, %v215
    %v217 = vpop.f32.mrb[0].mxu0
    %218 = vdwg.mxu0
    %v219 = vmax.f32 %v216, 0.0
    %s220 = scalar_lea.vmem [#allocation4], 256
    %v221 = vld [vmem:[%s220] sm:$0xff]
    %v222 = vld [vmem:[%s220 + $0x8] sm:$0xff]
    %v223 = vld [vmem:[%s220 + $0x10] sm:$0xff]
    %v224 = vld [vmem:[%s220 + $0x18] sm:$0xff]
    %v225 = vld [vmem:[%s220 + $0x20] sm:$0xff]
    %v226 = vld [vmem:[%s220 + $0x28] sm:$0xff]
    %v227 = vld [vmem:[%s220 + $0x30] sm:$0xff]
    %v228 = vld [vmem:[%s220 + $0x38] sm:$0xff]
    %v229 = vld [vmem:[%s220 + $0x40] sm:$0xff]
    %v230 = vld [vmem:[%s220 + $0x48] sm:$0xff]
    %v231 = vld [vmem:[%s220 + $0x50] sm:$0xff]
    %v232 = vld [vmem:[%s220 + $0x58] sm:$0xff]
    %v233 = vld [vmem:[%s220 + $0x60] sm:$0xff]
    %v234 = vld [vmem:[%s220 + $0x68] sm:$0xff]
    %v235 = vld [vmem:[%s220 + $0x70] sm:$0xff]
    %v236 = vld [vmem:[%s220 + $0x78] sm:$0xff]
    %s237 = scalar_lea.vmem %s2, 2
    %v238 = vld [vmem:[%s237] sm:$0x1]
    %v240 = vlaneseq
    %v241 = vshrl.u32 %v240, 7
    %v242 = vsub.s32 0, %v241
    %v243 = vrot.slane %v238, %v242
    %245 = vmatprep.subr.mxu0 0.0
    %246 = vmatpush1.msra.mxu0 %v221
    %247 = vmatprep.subr.mxu0 0.0
    %248 = vmatpush1.msra.mxu0 %v222
    %249 = vmatprep.subr.mxu0 0.0
    %250 = vmatpush1.msra.mxu0 %v223
    %251 = vmatprep.subr.mxu0 0.0
    %252 = vmatpush1.msra.mxu0 %v224
    %253 = vmatprep.subr.mxu0 0.0
    %254 = vmatpush1.msra.mxu0 %v225
    %255 = vmatprep.subr.mxu0 0.0
    %256 = vmatpush1.msra.mxu0 %v226
    %257 = vmatprep.subr.mxu0 0.0
    %258 = vmatpush1.msra.mxu0 %v227
    %259 = vmatprep.subr.mxu0 0.0
    %260 = vmatpush1.msra.mxu0 %v228
    %261 = vmatprep.subr.mxu0 0.0
    %262 = vmatpush1.msra.mxu0 %v229
    %263 = vmatprep.subr.mxu0 0.0
    %264 = vmatpush1.msra.mxu0 %v230
    %265 = vmatprep.subr.mxu0 0.0
    %266 = vmatpush1.msra.mxu0 %v231
    %267 = vmatprep.subr.mxu0 0.0
    %268 = vmatpush1.msra.mxu0 %v232
    %269 = vmatprep.subr.mxu0 0.0
    %270 = vmatpush1.msra.mxu0 %v233
    %271 = vmatprep.subr.mxu0 0.0
    %272 = vmatpush1.msra.mxu0 %v234
    %273 = vmatprep.subr.mxu0 0.0
    %274 = vmatpush1.msra.mxu0 %v235
    %275 = vmatprep.subr.mxu0 0.0
    %276 = vmatpush1.msra.mxu0 %v236
    %277 = vmatprep.subr.mxu0 0.0
    %278 = vmatpush1.msra.mxu0 0.0
    %279 = vmatprep.subr.mxu0 0.0
    %280 = vmatpush1.msra.mxu0 0.0
    %281 = vmatprep.subr.mxu0 0.0
    %282 = vmatpush1.msra.mxu0 0.0
    %283 = vmatprep.subr.mxu0 0.0
    %284 = vmatpush1.msra.mxu0 0.0
    %285 = vmatprep.subr.mxu0 0.0
    %286 = vmatpush1.msra.mxu0 0.0
    %287 = vmatprep.subr.mxu0 0.0
    %288 = vmatpush1.msra.mxu0 0.0
    %289 = vmatprep.subr.mxu0 0.0
    %290 = vmatpush1.msra.mxu0 0.0
    %291 = vmatprep.subr.mxu0 0.0
    %292 = vmatpush1.msra.mxu0 0.0
    %293 = vmatprep.subr.mxu0 0.0
    %294 = vmatpush1.msra.mxu0 0.0
    %295 = vmatprep.subr.mxu0 0.0
    %296 = vmatpush1.msra.mxu0 0.0
    %297 = vmatprep.subr.mxu0 0.0
    %298 = vmatpush1.msra.mxu0 0.0
    %299 = vmatprep.subr.mxu0 0.0
    %300 = vmatpush1.msra.mxu0 0.0
    %301 = vmatprep.subr.mxu0 0.0
    %302 = vmatpush1.msra.mxu0 0.0
    %303 = vmatprep.subr.mxu0 0.0
    %304 = vmatpush1.msra.mxu0 0.0
    %305 = vmatprep.subr.mxu0 0.0
    %306 = vmatpush1.msra.mxu0 0.0
    %307 = vmatprep.subr.mxu0 0.0
    %308 = vmatpush1.msra.mxu0 0.0
    %309 = vmatprep.mubr.f32.mxu0 0.0
    %310 = vmatmul.mubr.f32.gmra.mrb[0].mxu0 %v219
    %v311 = vpop.f32.mrb[0].mxu0
    %v312 = vadd.f32 %v243, %v311
    %v313 = vpop.f32.mrb[0].mxu0
    %314 = vdwg.mxu0
    %v315 = vmax.f32 %v312, 0.0
    %s316 = scalar_lea.vmem [#allocation4], 384
    %v317 = vld [vmem:[%s316] sm:$0xff]
    %v318 = vld [vmem:[%s316 + $0x8] sm:$0xff]
    %v319 = vld [vmem:[%s316 + $0x10] sm:$0xff]
    %v320 = vld [vmem:[%s316 + $0x18] sm:$0xff]
    %v321 = vld [vmem:[%s316 + $0x20] sm:$0xff]
    %v322 = vld [vmem:[%s316 + $0x28] sm:$0xff]
    %v323 = vld [vmem:[%s316 + $0x30] sm:$0xff]
    %v324 = vld [vmem:[%s316 + $0x38] sm:$0xff]
    %v325 = vld [vmem:[%s316 + $0x40] sm:$0xff]
    %v326 = vld [vmem:[%s316 + $0x48] sm:$0xff]
    %v327 = vld [vmem:[%s316 + $0x50] sm:$0xff]
    %v328 = vld [vmem:[%s316 + $0x58] sm:$0xff]
    %v329 = vld [vmem:[%s316 + $0x60] sm:$0xff]
    %v330 = vld [vmem:[%s316 + $0x68] sm:$0xff]
    %v331 = vld [vmem:[%s316 + $0x70] sm:$0xff]
    %v332 = vld [vmem:[%s316 + $0x78] sm:$0xff]
    %s333 = scalar_lea.vmem %s2, 3
    %v334 = vld [vmem:[%s333] sm:$0x1]
    %v336 = vlaneseq
    %v337 = vshrl.u32 %v336, 7
    %v338 = vsub.s32 0, %v337
    %v339 = vrot.slane %v334, %v338
    %341 = vmatprep.subr.mxu0 0.0
    %342 = vmatpush1.msra.mxu0 %v317
    %343 = vmatprep.subr.mxu0 0.0
    %344 = vmatpush1.msra.mxu0 %v318
    %345 = vmatprep.subr.mxu0 0.0
    %346 = vmatpush1.msra.mxu0 %v319
    %347 = vmatprep.subr.mxu0 0.0
    %348 = vmatpush1.msra.mxu0 %v320
    %349 = vmatprep.subr.mxu0 0.0
    %350 = vmatpush1.msra.mxu0 %v321
    %351 = vmatprep.subr.mxu0 0.0
    %352 = vmatpush1.msra.mxu0 %v322
    %353 = vmatprep.subr.mxu0 0.0
    %354 = vmatpush1.msra.mxu0 %v323
    %355 = vmatprep.subr.mxu0 0.0
    %356 = vmatpush1.msra.mxu0 %v324
    %357 = vmatprep.subr.mxu0 0.0
    %358 = vmatpush1.msra.mxu0 %v325
    %359 = vmatprep.subr.mxu0 0.0
    %360 = vmatpush1.msra.mxu0 %v326
    %361 = vmatprep.subr.mxu0 0.0
    %362 = vmatpush1.msra.mxu0 %v327
    %363 = vmatprep.subr.mxu0 0.0
    %364 = vmatpush1.msra.mxu0 %v328
    %365 = vmatprep.subr.mxu0 0.0
    %366 = vmatpush1.msra.mxu0 %v329
    %367 = vmatprep.subr.mxu0 0.0
    %368 = vmatpush1.msra.mxu0 %v330
    %369 = vmatprep.subr.mxu0 0.0
    %370 = vmatpush1.msra.mxu0 %v331
    %371 = vmatprep.subr.mxu0 0.0
    %372 = vmatpush1.msra.mxu0 %v332
    %373 = vmatprep.subr.mxu0 0.0
    %374 = vmatpush1.msra.mxu0 0.0
    %375 = vmatprep.subr.mxu0 0.0
    %376 = vmatpush1.msra.mxu0 0.0
    %377 = vmatprep.subr.mxu0 0.0
    %378 = vmatpush1.msra.mxu0 0.0
    %379 = vmatprep.subr.mxu0 0.0
    %380 = vmatpush1.msra.mxu0 0.0
    %381 = vmatprep.subr.mxu0 0.0
    %382 = vmatpush1.msra.mxu0 0.0
    %383 = vmatprep.subr.mxu0 0.0
    %384 = vmatpush1.msra.mxu0 0.0
    %385 = vmatprep.subr.mxu0 0.0
    %386 = vmatpush1.msra.mxu0 0.0
    %387 = vmatprep.subr.mxu0 0.0
    %388 = vmatpush1.msra.mxu0 0.0
    %389 = vmatprep.subr.mxu0 0.0
    %390 = vmatpush1.msra.mxu0 0.0
    %391 = vmatprep.subr.mxu0 0.0
    %392 = vmatpush1.msra.mxu0 0.0
    %393 = vmatprep.subr.mxu0 0.0
    %394 = vmatpush1.msra.mxu0 0.0
    %395 = vmatprep.subr.mxu0 0.0
    %396 = vmatpush1.msra.mxu0 0.0
    %397 = vmatprep.subr.mxu0 0.0
    %398 = vmatpush1.msra.mxu0 0.0
    %399 = vmatprep.subr.mxu0 0.0
    %400 = vmatpush1.msra.mxu0 0.0
    %401 = vmatprep.subr.mxu0 0.0
    %402 = vmatpush1.msra.mxu0 0.0
    %403 = vmatprep.subr.mxu0 0.0
    %404 = vmatpush1.msra.mxu0 0.0
    %405 = vmatprep.mubr.f32.mxu0 0.0
    %406 = vmatmul.mubr.f32.gmra.mrb[0].mxu0 %v315
    %v407 = vpop.f32.mrb[0].mxu0
    %v408 = vadd.f32 %v339, %v407
    %v409 = vpop.f32.mrb[0].mxu0
    %410 = vdwg.mxu0
    %v411 = vmax.f32 %v408, 0.0
    %s412 = scalar_lea.vmem [#allocation4], 512
    %v413 = vld [vmem:[%s412] sm:$0xff]
    %v414 = vld [vmem:[%s412 + $0x8] sm:$0xff]
    %v415 = vld [vmem:[%s412 + $0x10] sm:$0xff]
    %v416 = vld [vmem:[%s412 + $0x18] sm:$0xff]
    %v417 = vld [vmem:[%s412 + $0x20] sm:$0xff]
    %v418 = vld [vmem:[%s412 + $0x28] sm:$0xff]
    %v419 = vld [vmem:[%s412 + $0x30] sm:$0xff]
    %v420 = vld [vmem:[%s412 + $0x38] sm:$0xff]
    %v421 = vld [vmem:[%s412 + $0x40] sm:$0xff]
    %v422 = vld [vmem:[%s412 + $0x48] sm:$0xff]
    %v423 = vld [vmem:[%s412 + $0x50] sm:$0xff]
    %v424 = vld [vmem:[%s412 + $0x58] sm:$0xff]
    %v425 = vld [vmem:[%s412 + $0x60] sm:$0xff]
    %v426 = vld [vmem:[%s412 + $0x68] sm:$0xff]
    %v427 = vld [vmem:[%s412 + $0x70] sm:$0xff]
    %v428 = vld [vmem:[%s412 + $0x78] sm:$0xff]
    %s429 = scalar_lea.vmem %s2, 4
    %v430 = vld [vmem:[%s429] sm:$0x1]
    %v432 = vlaneseq
    %v433 = vshrl.u32 %v432, 7
    %v434 = vsub.s32 0, %v433
    %v435 = vrot.slane %v430, %v434
    %437 = vmatprep.subr.mxu0 0.0
    %438 = vmatpush1.msra.mxu0 %v413
    %439 = vmatprep.subr.mxu0 0.0
    %440 = vmatpush1.msra.mxu0 %v414
    %441 = vmatprep.subr.mxu0 0.0
    %442 = vmatpush1.msra.mxu0 %v415
    %443 = vmatprep.subr.mxu0 0.0
    %444 = vmatpush1.msra.mxu0 %v416
    %445 = vmatprep.subr.mxu0 0.0
    %446 = vmatpush1.msra.mxu0 %v417
    %447 = vmatprep.subr.mxu0 0.0
    %448 = vmatpush1.msra.mxu0 %v418
    %449 = vmatprep.subr.mxu0 0.0
    %450 = vmatpush1.msra.mxu0 %v419
    %451 = vmatprep.subr.mxu0 0.0
    %452 = vmatpush1.msra.mxu0 %v420
    %453 = vmatprep.subr.mxu0 0.0
    %454 = vmatpush1.msra.mxu0 %v421
    %455 = vmatprep.subr.mxu0 0.0
    %456 = vmatpush1.msra.mxu0 %v422
    %457 = vmatprep.subr.mxu0 0.0
    %458 = vmatpush1.msra.mxu0 %v423
    %459 = vmatprep.subr.mxu0 0.0
    %460 = vmatpush1.msra.mxu0 %v424
    %461 = vmatprep.subr.mxu0 0.0
    %462 = vmatpush1.msra.mxu0 %v425
    %463 = vmatprep.subr.mxu0 0.0
    %464 = vmatpush1.msra.mxu0 %v426
    %465 = vmatprep.subr.mxu0 0.0
    %466 = vmatpush1.msra.mxu0 %v427
    %467 = vmatprep.subr.mxu0 0.0
    %468 = vmatpush1.msra.mxu0 %v428
    %469 = vmatprep.subr.mxu0 0.0
    %470 = vmatpush1.msra.mxu0 0.0
    %471 = vmatprep.subr.mxu0 0.0
    %472 = vmatpush1.msra.mxu0 0.0
    %473 = vmatprep.subr.mxu0 0.0
    %474 = vmatpush1.msra.mxu0 0.0
    %475 = vmatprep.subr.mxu0 0.0
    %476 = vmatpush1.msra.mxu0 0.0
    %477 = vmatprep.subr.mxu0 0.0
    %478 = vmatpush1.msra.mxu0 0.0
    %479 = vmatprep.subr.mxu0 0.0
    %480 = vmatpush1.msra.mxu0 0.0
    %481 = vmatprep.subr.mxu0 0.0
    %482 = vmatpush1.msra.mxu0 0.0
    %483 = vmatprep.subr.mxu0 0.0
    %484 = vmatpush1.msra.mxu0 0.0
    %485 = vmatprep.subr.mxu0 0.0
    %486 = vmatpush1.msra.mxu0 0.0
    %487 = vmatprep.subr.mxu0 0.0
    %488 = vmatpush1.msra.mxu0 0.0
    %489 = vmatprep.subr.mxu0 0.0
    %490 = vmatpush1.msra.mxu0 0.0
    %491 = vmatprep.subr.mxu0 0.0
    %492 = vmatpush1.msra.mxu0 0.0
    %493 = vmatprep.subr.mxu0 0.0
    %494 = vmatpush1.msra.mxu0 0.0
    %495 = vmatprep.subr.mxu0 0.0
    %496 = vmatpush1.msra.mxu0 0.0
    %497 = vmatprep.subr.mxu0 0.0
    %498 = vmatpush1.msra.mxu0 0.0
    %499 = vmatprep.subr.mxu0 0.0
    %500 = vmatpush1.msra.mxu0 0.0
    %501 = vmatprep.mubr.f32.mxu0 0.0
    %502 = vmatmul.mubr.f32.gmra.mrb[0].mxu0 %v411
    %v503 = vpop.f32.mrb[0].mxu0
    %v504 = vadd.f32 %v435, %v503
    %v505 = vpop.f32.mrb[0].mxu0
    %506 = vdwg.mxu0
    %v507 = vmax.f32 %v504, 0.0
    %s508 = scalar_lea.vmem [#allocation4], 640
    %v509 = vld [vmem:[%s508] sm:$0xff]
    %v510 = vld [vmem:[%s508 + $0x8] sm:$0xff]
    %v511 = vld [vmem:[%s508 + $0x10] sm:$0xff]
    %v512 = vld [vmem:[%s508 + $0x18] sm:$0xff]
    %v513 = vld [vmem:[%s508 + $0x20] sm:$0xff]
    %v514 = vld [vmem:[%s508 + $0x28] sm:$0xff]
    %v515 = vld [vmem:[%s508 + $0x30] sm:$0xff]
    %v516 = vld [vmem:[%s508 + $0x38] sm:$0xff]
    %v517 = vld [vmem:[%s508 + $0x40] sm:$0xff]
    %v518 = vld [vmem:[%s508 + $0x48] sm:$0xff]
    %v519 = vld [vmem:[%s508 + $0x50] sm:$0xff]
    %v520 = vld [vmem:[%s508 + $0x58] sm:$0xff]
    %v521 = vld [vmem:[%s508 + $0x60] sm:$0xff]
    %v522 = vld [vmem:[%s508 + $0x68] sm:$0xff]
    %v523 = vld [vmem:[%s508 + $0x70] sm:$0xff]
    %v524 = vld [vmem:[%s508 + $0x78] sm:$0xff]
    %s525 = scalar_lea.vmem %s2, 5
    %v526 = vld [vmem:[%s525] sm:$0x1]
    %v528 = vlaneseq
    %v529 = vshrl.u32 %v528, 7
    %v530 = vsub.s32 0, %v529
    %v531 = vrot.slane %v526, %v530
    %533 = vmatprep.subr.mxu0 0.0
    %534 = vmatpush1.msra.mxu0 %v509
    %535 = vmatprep.subr.mxu0 0.0
    %536 = vmatpush1.msra.mxu0 %v510
    %537 = vmatprep.subr.mxu0 0.0
    %538 = vmatpush1.msra.mxu0 %v511
    %539 = vmatprep.subr.mxu0 0.0
    %540 = vmatpush1.msra.mxu0 %v512
    %541 = vmatprep.subr.mxu0 0.0
    %542 = vmatpush1.msra.mxu0 %v513
    %543 = vmatprep.subr.mxu0 0.0
    %544 = vmatpush1.msra.mxu0 %v514
    %545 = vmatprep.subr.mxu0 0.0
    %546 = vmatpush1.msra.mxu0 %v515
    %547 = vmatprep.subr.mxu0 0.0
    %548 = vmatpush1.msra.mxu0 %v516
    %549 = vmatprep.subr.mxu0 0.0
    %550 = vmatpush1.msra.mxu0 %v517
    %551 = vmatprep.subr.mxu0 0.0
    %552 = vmatpush1.msra.mxu0 %v518
    %553 = vmatprep.subr.mxu0 0.0
    %554 = vmatpush1.msra.mxu0 %v519
    %555 = vmatprep.subr.mxu0 0.0
    %556 = vmatpush1.msra.mxu0 %v520
    %557 = vmatprep.subr.mxu0 0.0
    %558 = vmatpush1.msra.mxu0 %v521
    %559 = vmatprep.subr.mxu0 0.0
    %560 = vmatpush1.msra.mxu0 %v522
    %561 = vmatprep.subr.mxu0 0.0
    %562 = vmatpush1.msra.mxu0 %v523
    %563 = vmatprep.subr.mxu0 0.0
    %564 = vmatpush1.msra.mxu0 %v524
    %565 = vmatprep.subr.mxu0 0.0
    %566 = vmatpush1.msra.mxu0 0.0
    %567 = vmatprep.subr.mxu0 0.0
    %568 = vmatpush1.msra.mxu0 0.0
    %569 = vmatprep.subr.mxu0 0.0
    %570 = vmatpush1.msra.mxu0 0.0
    %571 = vmatprep.subr.mxu0 0.0
    %572 = vmatpush1.msra.mxu0 0.0
    %573 = vmatprep.subr.mxu0 0.0
    %574 = vmatpush1.msra.mxu0 0.0
    %575 = vmatprep.subr.mxu0 0.0
    %576 = vmatpush1.msra.mxu0 0.0
    %577 = vmatprep.subr.mxu0 0.0
    %578 = vmatpush1.msra.mxu0 0.0
    %579 = vmatprep.subr.mxu0 0.0
    %580 = vmatpush1.msra.mxu0 0.0
    %581 = vmatprep.subr.mxu0 0.0
    %582 = vmatpush1.msra.mxu0 0.0
    %583 = vmatprep.subr.mxu0 0.0
    %584 = vmatpush1.msra.mxu0 0.0
    %585 = vmatprep.subr.mxu0 0.0
    %586 = vmatpush1.msra.mxu0 0.0
    %587 = vmatprep.subr.mxu0 0.0
    %588 = vmatpush1.msra.mxu0 0.0
    %589 = vmatprep.subr.mxu0 0.0
    %590 = vmatpush1.msra.mxu0 0.0
    %591 = vmatprep.subr.mxu0 0.0
    %592 = vmatpush1.msra.mxu0 0.0
    %593 = vmatprep.subr.mxu0 0.0
    %594 = vmatpush1.msra.mxu0 0.0
    %595 = vmatprep.subr.mxu0 0.0
    %596 = vmatpush1.msra.mxu0 0.0
    %597 = vmatprep.mubr.f32.mxu0 0.0
    %598 = vmatmul.mubr.f32.gmra.mrb[0].mxu0 %v507
    %v599 = vpop.f32.mrb[0].mxu0
    %v600 = vadd.f32 %v531, %v599
    %v601 = vpop.f32.mrb[0].mxu0
    %602 = vdwg.mxu0
    %vm603 = vcmask 15360
    %604 = vst.msk [vmem:[%s3] sm:$0xff] %vm603, %v600
    // Predicated region
    $region22: #{efficiency_model_forward.1} parent=1 // pred_check
      _
    $region23: #{efficiency_model_forward.1} parent=1 // pred_check_branch
      %606 = sbr.rel (0) target = $region25
    $region24: #{efficiency_model_forward.1} parent=1 // pred_region
      _
    $region25: #{efficiency_model_forward.1} parent=1 // pred_fallthru
      _
    // Predicated region
    $region26: #{efficiency_model_forward.1} parent=1 // pred_check
      _
    $region27: #{efficiency_model_forward.1} parent=1 // pred_check_branch
      %608 = sbr.rel (0) target = $region29
    $region28: #{efficiency_model_forward.1} parent=1 // pred_region
      _
    $region29: #{efficiency_model_forward.1} parent=1 // pred_fallthru
      _
    %609 = vsyncpa [#allocation3], 1
    %610 = vsyncpa [#allocation5], 1

</llo_original>
